<compile_context>
chip_gen: v6e
topology: v6e:2x2x1
jax: 0.10.0
libtpu: 0.0.40
codegen_flags: <defaults>
</compile_context>

<pallas_src>
import math

import jax
import jax.numpy as jnp
import numpy as np
from jax import lax
from jax.experimental import pallas as pl
from jax.experimental.pallas import tpu as pltpu

# ----------------------- static config -----------------------
DIM_FEATURES_CONTINUOUS = 4
DIM_FEATURES_DISCRETE = 1
DIM_CONTEXT_CONTINUOUS = 6
DIM_CONTEXT_DISCRETE = 1
VOCAB_SIZE = 8
VOCAB_SIZE_CONTEXT = 7

DIM_TIME_EMB = 16              # even -> the odd-dim zero-pad branch never triggers
DIM_FEATURES_CONTINUOUS_EMB = 16
DIM_FEATURES_DISCRETE_EMB = 8
DIM_CONTEXT_CONTINUOUS_EMB = 8
DIM_CONTEXT_DISCRETE_EMB = 6
MAX_PERIOD = 10000.0

DIM_FEATURES_OUT = DIM_TIME_EMB + DIM_FEATURES_CONTINUOUS_EMB + DIM_FEATURES_DISCRETE_EMB  # 40
DIM_CONTEXT_OUT = DIM_TIME_EMB + DIM_CONTEXT_CONTINUOUS_EMB + DIM_CONTEXT_DISCRETE_EMB     # 30

# output lane layout (time lanes 0:16 shared by features & context)
F_CONT_LO, F_CONT_HI = DIM_TIME_EMB, DIM_TIME_EMB + DIM_FEATURES_CONTINUOUS_EMB   # 16:32
F_DISC_LO, F_DISC_HI = F_CONT_HI, F_CONT_HI + DIM_FEATURES_DISCRETE_EMB           # 32:40
C_CONT_LO, C_CONT_HI = DIM_TIME_EMB, DIM_TIME_EMB + DIM_CONTEXT_CONTINUOUS_EMB    # 16:24
C_DISC_LO, C_DISC_HI = C_CONT_HI, C_CONT_HI + DIM_CONTEXT_DISCRETE_EMB            # 24:30

# parameter slab row layout: (W_SLAB_ROWS, DIM_FEATURES_OUT) f32
R_WX_LO, R_WX_HI = 0, DIM_FEATURES_CONTINUOUS                    # 0:4   x      -> lanes 16:32
R_WK_LO, R_WK_HI = R_WX_HI, R_WX_HI + VOCAB_SIZE                 # 4:12  oh(k)  -> lanes 32:40
R_WCC_LO, R_WCC_HI = R_WK_HI, R_WK_HI + DIM_CONTEXT_CONTINUOUS   # 12:18 cc     -> lanes 16:24
R_WCD_LO, R_WCD_HI = R_WCC_HI, R_WCC_HI + VOCAB_SIZE_CONTEXT     # 18:25 oh(cd) -> lanes 24:30
R_BF = R_WCD_HI                                                  # 25  features bias row
R_BC = R_BF + 1                                                  # 26  context bias row
R_FREQ = R_BC + 1                                                # 27  sinusoidal frequency row
R_PHASE = R_FREQ + 1                                             # 28  phase row (0 / -pi/2)
W_SLAB_ROWS = 32                                                 # padded to a multiple of 8


# ----------------------- kernel -----------------------
def _input_embeddings_kernel(t_ref, x_ref, k_ref, mask_ref, cc_ref, cd_ref, w_ref,
                             feat_ref, ctx_ref):
    tb, n, _ = x_ref.shape

    # --- time embedding: once per batch row, 40 lanes wide with lanes 0:16 live ---
    t = t_ref[...]                                          # (TB, 1)
    freqs = w_ref[R_FREQ:R_FREQ + 1, :]                     # (1, 40) precomputed constant
    phase = w_ref[R_PHASE:R_PHASE + 1, :]                   # (1, 40): 0 cos lanes, -pi/2 sin lanes
    lane = lax.broadcasted_iota(jnp.int32, (1, DIM_FEATURES_OUT), 1)
    t_emb = jnp.where(lane < DIM_TIME_EMB, jnp.cos(t * freqs + phase), 0.0)   # (TB, 40)

    # per-batch additive terms with the linear biases folded in (one add on the big tensor)
    feat_add = t_emb + w_ref[R_BF:R_BF + 1, :]              # (TB, 40)
    ctx_add = t_emb + w_ref[R_BC:R_BC + 1, :]               # (TB, 40); lanes 0:30 live

    # --- particle features: x @ Wx + onehot(k) @ Wk land directly in lanes 16:32 / 32:40 ---
    x2 = x_ref[...].reshape(tb * n, DIM_FEATURES_CONTINUOUS)
    k2 = k_ref[...].reshape(tb * n, 1)
    koh = (k2 == lax.broadcasted_iota(jnp.int32, (1, VOCAB_SIZE), 1)).astype(jnp.float32)
    fused = (jnp.dot(x2, w_ref[R_WX_LO:R_WX_HI, :], preferred_element_type=jnp.float32)
             + jnp.dot(koh, w_ref[R_WK_LO:R_WK_HI, :], preferred_element_type=jnp.float32))
    feat_ref[...] = (fused.reshape(tb, n, DIM_FEATURES_OUT)
                     + feat_add[:, None, :]) * mask_ref[...]

    # --- context: cc @ Wcc + onehot(cd) @ Wcd land in lanes 16:24 / 24:30 ---
    cdoh = (cd_ref[...] == lax.broadcasted_iota(jnp.int32, (1, VOCAB_SIZE_CONTEXT), 1)
            ).astype(jnp.float32)                           # (TB, 7)
    cmm = (jnp.dot(cc_ref[...], w_ref[R_WCC_LO:R_WCC_HI, :], preferred_element_type=jnp.float32)
           + jnp.dot(cdoh, w_ref[R_WCD_LO:R_WCD_HI, :], preferred_element_type=jnp.float32))
    ctx_ref[...] = (cmm + ctx_add)[:, :DIM_CONTEXT_OUT]


# ----------------------- tiling -----------------------
def _round_up(v, m):
    return -(-v // m) * m


def _choose_tile(B, N):
    """Pick batch tile TB (and padded batch Bp) from a conservative VMEM budget."""
    if B <= 8:
        return B, B                      # single step; every block dim equals the full array dim
    n_pad = _round_up(N, 8)
    # f32 VMEM bytes per batch row per pipeline buffer (narrow trailing dims pad to 128 lanes):
    per_row = (4 * n_pad * 128 * 4       # x, k, mask input tiles + feature output tile
               + 4 * 128 * 4)            # t, cc, cd rows + context output row
    budget = 12 * 1024 * 1024            # fits v5e's 16 MiB scoped-VMEM default with headroom
    tb = max(8, min(budget // (2 * per_row), 256))          # x2: double-buffered pipeline
    tb = min(tb, _round_up(-(-B // 2), 8))                  # >=2 grid steps -> both v7x TCs busy
    tb = max(8, (tb // 8) * 8)
    return tb, _round_up(B, tb)


# ----------------------- wrapper -----------------------
@jax.jit
def input_embeddings_forward(w_slab, t, x, k, context_continuous, context_discrete, mask):
    """Returns (features (B, N, 40), context (B, 30)), matching InputEmbeddings.forward."""
    B, N, _ = x.shape
    t2 = jnp.reshape(t, (B, 1)).astype(jnp.float32)
    xx = x.astype(jnp.float32)
    kk = jnp.reshape(k, (B, N, 1)).astype(jnp.int32)        # out-of-range k -> zero embedding
    mm = jnp.reshape(mask, (B, N, 1)).astype(jnp.float32)
    cc = context_continuous.astype(jnp.float32)
    cd = jnp.reshape(context_discrete, (B, 1)).astype(jnp.int32)

    TB, Bp = _choose_tile(B, N)
    if Bp != B:
        pad = ((0, Bp - B),)
        t2 = jnp.pad(t2, pad + ((0, 0),))
        xx = jnp.pad(xx, pad + ((0, 0), (0, 0)))
        kk = jnp.pad(kk, pad + ((0, 0), (0, 0)))
        mm = jnp.pad(mm, pad + ((0, 0), (0, 0)))
        cc = jnp.pad(cc, pad + ((0, 0),))
        cd = jnp.pad(cd, pad + ((0, 0),))

    feat, ctx = pl.pallas_call(
        _input_embeddings_kernel,
        out_shape=(jax.ShapeDtypeStruct((Bp, N, DIM_FEATURES_OUT), jnp.float32),
                   jax.ShapeDtypeStruct((Bp, DIM_CONTEXT_OUT), jnp.float32)),
        grid=(Bp // TB,),
        in_specs=[
            pl.BlockSpec((TB, 1), lambda i: (i, 0)),                               # t
            pl.BlockSpec((TB, N, DIM_FEATURES_CONTINUOUS), lambda i: (i, 0, 0)),   # x
            pl.BlockSpec((TB, N, 1), lambda i: (i, 0, 0)),                         # k
            pl.BlockSpec((TB, N, 1), lambda i: (i, 0, 0)),                         # mask
            pl.BlockSpec((TB, DIM_CONTEXT_CONTINUOUS), lambda i: (i, 0)),          # context cont.
            pl.BlockSpec((TB, 1), lambda i: (i, 0)),                               # context disc.
            pl.BlockSpec((W_SLAB_ROWS, DIM_FEATURES_OUT), lambda i: (0, 0)),       # params (resident)
        ],
        out_specs=(
            pl.BlockSpec((TB, N, DIM_FEATURES_OUT), lambda i: (i, 0, 0)),
            pl.BlockSpec((TB, DIM_CONTEXT_OUT), lambda i: (i, 0)),
        ),
        compiler_params=pltpu.CompilerParams(
            dimension_semantics=("parallel",),
            vmem_limit_bytes=48 * 1024 * 1024),
    )(t2, xx, kk, mm, cc, cd, w_slab)

    if Bp != B:        # only pay for a batch slice when padding was required
        feat, ctx = feat[:B], ctx[:B]
    return feat, ctx


# ----------------------- parameter packing -----------------------
def pack_params(params):
    """Pack the six small parameter tensors + the sinusoidal freq/phase rows into one slab."""
    w = np.zeros((W_SLAB_ROWS, DIM_FEATURES_OUT), np.float32)
    w[R_WX_LO:R_WX_HI, F_CONT_LO:F_CONT_HI] = np.asarray(params["w_cont"])
    w[R_WK_LO:R_WK_HI, F_DISC_LO:F_DISC_HI] = np.asarray(params["emb_k"])
    w[R_WCC_LO:R_WCC_HI, C_CONT_LO:C_CONT_HI] = np.asarray(params["w_cc"])
    w[R_WCD_LO:R_WCD_HI, C_DISC_LO:C_DISC_HI] = np.asarray(params["emb_cd"])
    w[R_BF, F_CONT_LO:F_CONT_HI] = np.asarray(params["b_cont"]).reshape(-1)
    w[R_BC, C_CONT_LO:C_CONT_HI] = np.asarray(params["b_cc"]).reshape(-1)
    half = DIM_TIME_EMB // 2
    base = np.exp(-math.log(MAX_PERIOD) * np.arange(half, dtype=np.float32) / half)
    w[R_FREQ, :half] = base                       # cos lanes
    w[R_FREQ, half:DIM_TIME_EMB] = base           # sin lanes
    w[R_PHASE, half:DIM_TIME_EMB] = -math.pi / 2  # sin(x) = cos(x - pi/2)
    return jnp.asarray(w)


# ----------------------- pure-JAX reference -----------------------
def reference_forward(params, t, x, k, context_continuous, context_discrete, mask):
    B, N, _ = x.shape
    t2 = t.reshape(B, 1).astype(jnp.float32)
    half = DIM_TIME_EMB // 2
    freqs = jnp.exp(-math.log(MAX_PERIOD) * jnp.arange(half, dtype=jnp.float32) / half)
    args = t2 * freqs[None]
    t_emb = jnp.concatenate([jnp.cos(args), jnp.sin(args)], axis=-1)     # (B, DT)

    t_emb_b = jnp.broadcast_to(t_emb[:, None, :], (B, N, DIM_TIME_EMB))
    emb_cont = jnp.einsum("bnd,de->bne", x.astype(jnp.float32), params["w_cont"]) + params["b_cont"][0]
    emb_disc = params["emb_k"][k.reshape(B, N).astype(jnp.int32)]
    feat = jnp.concatenate([t_emb_b, emb_cont, emb_disc], axis=-1) * mask.astype(jnp.float32)

    emb_cc = context_continuous.astype(jnp.float32) @ params["w_cc"] + params["b_cc"][0]
    emb_cd = params["emb_cd"][context_discrete.reshape(B).astype(jnp.int32)]
    ctx = jnp.concatenate([t_emb, emb_cc, emb_cd], axis=-1)
    return feat, ctx


# ----------------------- params -----------------------
def init_params(key):
    ks = jax.random.split(key, 6)
    return {
        "w_cont": jax.random.normal(ks[0], (DIM_FEATURES_CONTINUOUS, DIM_FEATURES_CONTINUOUS_EMB), jnp.float32) * 0.1,
        "b_cont": jax.random.normal(ks[1], (1, DIM_FEATURES_CONTINUOUS_EMB), jnp.float32) * 0.1,
        "emb_k": jax.random.normal(ks[2], (VOCAB_SIZE, DIM_FEATURES_DISCRETE_EMB), jnp.float32),
        "w_cc": jax.random.normal(ks[3], (DIM_CONTEXT_CONTINUOUS, DIM_CONTEXT_CONTINUOUS_EMB), jnp.float32) * 0.1,
        "b_cc": jax.random.normal(ks[4], (1, DIM_CONTEXT_CONTINUOUS_EMB), jnp.float32) * 0.1,
        "emb_cd": jax.random.normal(ks[5], (VOCAB_SIZE_CONTEXT, DIM_CONTEXT_DISCRETE_EMB), jnp.float32),
    }


if __name__ == "__main__":
    B, N = 2, 8
    key = jax.random.PRNGKey(0)
    kp, kt, kx, kk_, kcc, kcd, km = jax.random.split(key, 7)

    params = init_params(kp)
    w_slab = pack_params(params)

    t = jax.random.uniform(kt, (B, 1), jnp.float32)                            # time
    x = jax.random.normal(kx, (B, N, DIM_FEATURES_CONTINUOUS), jnp.float32)    # continuous features
    k = jax.random.randint(kk_, (B, N, DIM_FEATURES_DISCRETE), 0, VOCAB_SIZE)  # discrete features
    context_continuous = jax.random.normal(kcc, (B, DIM_CONTEXT_CONTINUOUS), jnp.float32)
    context_discrete = jax.random.randint(kcd, (B, DIM_CONTEXT_DISCRETE), 0, VOCAB_SIZE_CONTEXT)
    mask = (jax.random.uniform(km, (B, N, 1)) > 0.3).astype(jnp.float32)

    feat, ctx = input_embeddings_forward(w_slab, t, x, k, context_continuous, context_discrete, mask)
    feat = jax.block_until_ready(feat)
    ctx = jax.block_until_ready(ctx)

    feat_ref, ctx_ref = reference_forward(params, t, x, k, context_continuous, context_discrete, mask)
    np.testing.assert_allclose(np.asarray(feat), np.asarray(feat_ref), rtol=1e-5, atol=1e-5)
    np.testing.assert_allclose(np.asarray(ctx), np.asarray(ctx_ref), rtol=1e-5, atol=1e-5)

    assert feat.shape == (B, N, DIM_FEATURES_OUT)
    assert ctx.shape == (B, DIM_CONTEXT_OUT)
    print("KERNEL_OK")
</pallas_src>

<mosaic_0001>
module attributes {stable_mosaic.version = 11 : i64} {
  func.func @_input_embeddings_kernel(%arg0: i32, %arg1: memref<2x1xf32, #tpu.memory_space<vmem>>, %arg2: memref<2x8x4xf32, #tpu.memory_space<vmem>>, %arg3: memref<2x8x1xi32, #tpu.memory_space<vmem>>, %arg4: memref<2x8x1xf32, #tpu.memory_space<vmem>>, %arg5: memref<2x6xf32, #tpu.memory_space<vmem>>, %arg6: memref<2x1xi32, #tpu.memory_space<vmem>>, %arg7: memref<32x40xf32, #tpu.memory_space<vmem>>, %arg8: memref<2x8x40xf32, #tpu.memory_space<vmem>>, %arg9: memref<2x30xf32, #tpu.memory_space<vmem>>) attributes {dimension_semantics = [#tpu.dimension_semantics<parallel>], iteration_bounds = array<i64: 1>, scalar_prefetch = 0 : i64, scratch_operands = 0 : i64, tpu.core_type = #tpu.core_type<tc>, window_params = [{transform_indices = @transform_0, window_bounds = array<i64: 2, 1>}, {transform_indices = @transform_1, window_bounds = array<i64: 2, 8, 4>}, {transform_indices = @transform_2, window_bounds = array<i64: 2, 8, 1>}, {transform_indices = @transform_3, window_bounds = array<i64: 2, 8, 1>}, {transform_indices = @transform_4, window_bounds = array<i64: 2, 6>}, {transform_indices = @transform_5, window_bounds = array<i64: 2, 1>}, {pipeline_mode = #tpu.pipeline_mode<synchronous>, transform_indices = @transform_6, window_bounds = array<i64: 32, 40>}, {transform_indices = @transform_7, window_bounds = array<i64: 2, 8, 40>}, {transform_indices = @transform_8, window_bounds = array<i64: 2, 30>}]} {
    %c0 = arith.constant 0 : index
    %c0_0 = arith.constant 0 : index
    %0 = vector.load %arg1[%c0, %c0_0] : memref<2x1xf32, #tpu.memory_space<vmem>>, vector<2x1xf32>
    %c27 = arith.constant 27 : index
    %c0_1 = arith.constant 0 : index
    %1 = vector.load %arg7[%c27, %c0_1] : memref<32x40xf32, #tpu.memory_space<vmem>>, vector<1x40xf32>
    %c28 = arith.constant 28 : index
    %c0_2 = arith.constant 0 : index
    %2 = vector.load %arg7[%c28, %c0_2] : memref<32x40xf32, #tpu.memory_space<vmem>>, vector<1x40xf32>
    %3 = tpu.iota {dimensions = array<i32: 1>} : vector<1x40xi32>
    %c16_i32 = arith.constant 16 : i32
    %4 = vector.broadcast %c16_i32 : i32 to vector<1x40xi32>
    %5 = arith.cmpi slt, %3, %4 : vector<1x40xi32>
    %6 = vector.broadcast %0 : vector<2x1xf32> to vector<2x40xf32>
    %7 = vector.broadcast %1 : vector<1x40xf32> to vector<2x40xf32>
    %8 = arith.mulf %6, %7 : vector<2x40xf32>
    %9 = vector.broadcast %2 : vector<1x40xf32> to vector<2x40xf32>
    %10 = arith.addf %8, %9 : vector<2x40xf32>
    %11 = math.cos %10 : vector<2x40xf32>
    %cst = arith.constant 0.000000e+00 : f32
    %12 = vector.shape_cast %5 : vector<1x40xi1> to vector<1x40xi1>
    %13 = vector.broadcast %12 : vector<1x40xi1> to vector<2x40xi1>
    %14 = vector.broadcast %cst : f32 to vector<2x40xf32>
    %15 = arith.select %13, %11, %14 : vector<2x40xi1>, vector<2x40xf32>
    %c25 = arith.constant 25 : index
    %c0_3 = arith.constant 0 : index
    %16 = vector.load %arg7[%c25, %c0_3] : memref<32x40xf32, #tpu.memory_space<vmem>>, vector<1x40xf32>
    %17 = vector.broadcast %16 : vector<1x40xf32> to vector<2x40xf32>
    %18 = arith.addf %15, %17 : vector<2x40xf32>
    %c26 = arith.constant 26 : index
    %c0_4 = arith.constant 0 : index
    %19 = vector.load %arg7[%c26, %c0_4] : memref<32x40xf32, #tpu.memory_space<vmem>>, vector<1x40xf32>
    %20 = vector.broadcast %19 : vector<1x40xf32> to vector<2x40xf32>
    %21 = arith.addf %15, %20 : vector<2x40xf32>
    %c0_5 = arith.constant 0 : index
    %c0_6 = arith.constant 0 : index
    %c0_7 = arith.constant 0 : index
    %22 = vector.load %arg2[%c0_5, %c0_6, %c0_7] : memref<2x8x4xf32, #tpu.memory_space<vmem>>, vector<2x8x4xf32>
    %23 = vector.shape_cast %22 : vector<2x8x4xf32> to vector<16x4xf32>
    %c0_8 = arith.constant 0 : index
    %c0_9 = arith.constant 0 : index
    %c0_10 = arith.constant 0 : index
    %24 = vector.load %arg3[%c0_8, %c0_9, %c0_10] : memref<2x8x1xi32, #tpu.memory_space<vmem>>, vector<2x8x1xi32>
    %25 = vector.shape_cast %24 : vector<2x8x1xi32> to vector<16x1xi32>
    %26 = tpu.iota {dimensions = array<i32: 1>} : vector<1x8xi32>
    %27 = vector.broadcast %25 : vector<16x1xi32> to vector<16x8xi32>
    %28 = vector.broadcast %26 : vector<1x8xi32> to vector<16x8xi32>
    %29 = arith.cmpi eq, %27, %28 : vector<16x8xi32>
    %30 = arith.extui %29 : vector<16x8xi1> to vector<16x8xi32>
    %31 = arith.sitofp %30 : vector<16x8xi32> to vector<16x8xf32>
    %c0_11 = arith.constant 0 : index
    %c0_12 = arith.constant 0 : index
    %32 = vector.load %arg7[%c0_11, %c0_12] : memref<32x40xf32, #tpu.memory_space<vmem>>, vector<4x40xf32>
    %cst_13 = arith.constant dense<0.000000e+00> : vector<16x40xf32>
    %33 = tpu.matmul %23, %32, %cst_13 {dimension_numbers = #tpu.dot_dimension_numbers<[1], [0], [0], [1], [0, 0, 1, 1], [], []>} : vector<16x4xf32>, vector<4x40xf32>, vector<16x40xf32> -> vector<16x40xf32>
    %c4 = arith.constant 4 : index
    %c0_14 = arith.constant 0 : index
    %34 = vector.load %arg7[%c4, %c0_14] : memref<32x40xf32, #tpu.memory_space<vmem>>, vector<8x40xf32>
    %cst_15 = arith.constant dense<0.000000e+00> : vector<16x40xf32>
    %35 = tpu.matmul %31, %34, %cst_15 {dimension_numbers = #tpu.dot_dimension_numbers<[1], [0], [0], [1], [0, 0, 1, 1], [], []>} : vector<16x8xf32>, vector<8x40xf32>, vector<16x40xf32> -> vector<16x40xf32>
    %36 = arith.addf %33, %35 : vector<16x40xf32>
    %37 = vector.shape_cast %36 : vector<16x40xf32> to vector<2x8x40xf32>
    %38 = vector.shape_cast %18 : vector<2x40xf32> to vector<2x1x40xf32>
    %39 = vector.broadcast %38 : vector<2x1x40xf32> to vector<2x8x40xf32>
    %40 = arith.addf %37, %39 : vector<2x8x40xf32>
    %c0_16 = arith.constant 0 : index
    %c0_17 = arith.constant 0 : index
    %c0_18 = arith.constant 0 : index
    %41 = vector.load %arg4[%c0_16, %c0_17, %c0_18] : memref<2x8x1xf32, #tpu.memory_space<vmem>>, vector<2x8x1xf32>
    %42 = vector.broadcast %41 : vector<2x8x1xf32> to vector<2x8x40xf32>
    %43 = arith.mulf %40, %42 : vector<2x8x40xf32>
    %c0_19 = arith.constant 0 : index
    %c0_20 = arith.constant 0 : index
    %c0_21 = arith.constant 0 : index
    %44 = vector.load %arg8[%c0_19, %c0_20, %c0_21] : memref<2x8x40xf32, #tpu.memory_space<vmem>>, vector<2x8x40xf32>
    tpu.vector_store %arg8[%c0_19, %c0_20, %c0_21], %43 {strides = array<i32>} : memref<2x8x40xf32, #tpu.memory_space<vmem>>, vector<2x8x40xf32>,
    %c0_22 = arith.constant 0 : index
    %c0_23 = arith.constant 0 : index
    %45 = vector.load %arg6[%c0_22, %c0_23] : memref<2x1xi32, #tpu.memory_space<vmem>>, vector<2x1xi32>
    %46 = tpu.iota {dimensions = array<i32: 1>} : vector<1x7xi32>
    %47 = vector.broadcast %45 : vector<2x1xi32> to vector<2x7xi32>
    %48 = vector.broadcast %46 : vector<1x7xi32> to vector<2x7xi32>
    %49 = arith.cmpi eq, %47, %48 : vector<2x7xi32>
    %50 = arith.extui %49 : vector<2x7xi1> to vector<2x7xi32>
    %51 = arith.sitofp %50 : vector<2x7xi32> to vector<2x7xf32>
    %c0_24 = arith.constant 0 : index
    %c0_25 = arith.constant 0 : index
    %52 = vector.load %arg5[%c0_24, %c0_25] : memref<2x6xf32, #tpu.memory_space<vmem>>, vector<2x6xf32>
    %c12 = arith.constant 12 : index
    %c0_26 = arith.constant 0 : index
    %53 = vector.load %arg7[%c12, %c0_26] : memref<32x40xf32, #tpu.memory_space<vmem>>, vector<6x40xf32>
    %cst_27 = arith.constant dense<0.000000e+00> : vector<2x40xf32>
    %54 = tpu.matmul %52, %53, %cst_27 {dimension_numbers = #tpu.dot_dimension_numbers<[1], [0], [0], [1], [0, 0, 1, 1], [], []>} : vector<2x6xf32>, vector<6x40xf32>, vector<2x40xf32> -> vector<2x40xf32>
    %c18 = arith.constant 18 : index
    %c0_28 = arith.constant 0 : index
    %55 = vector.load %arg7[%c18, %c0_28] : memref<32x40xf32, #tpu.memory_space<vmem>>, vector<7x40xf32>
    %cst_29 = arith.constant dense<0.000000e+00> : vector<2x40xf32>
    %56 = tpu.matmul %51, %55, %cst_29 {dimension_numbers = #tpu.dot_dimension_numbers<[1], [0], [0], [1], [0, 0, 1, 1], [], []>} : vector<2x7xf32>, vector<7x40xf32>, vector<2x40xf32> -> vector<2x40xf32>
    %57 = arith.addf %54, %56 : vector<2x40xf32>
    %58 = arith.addf %57, %21 : vector<2x40xf32>
    %59 = vector.extract_strided_slice %58 {offsets = [0, 0], sizes = [2, 30], strides = [1, 1]} : vector<2x40xf32> to vector<2x30xf32>
    %c0_30 = arith.constant 0 : index
    %c0_31 = arith.constant 0 : index
    %60 = vector.load %arg9[%c0_30, %c0_31] : memref<2x30xf32, #tpu.memory_space<vmem>>, vector<2x30xf32>
    tpu.vector_store %arg9[%c0_30, %c0_31], %59 {strides = array<i32>} : memref<2x30xf32, #tpu.memory_space<vmem>>, vector<2x30xf32>,
    return
  }
  func.func @transform_0(%arg0: i32) -> (i32, i32) {
    %c0_i32 = arith.constant 0 : i32
    %c0_i32_0 = arith.constant 0 : i32
    return %arg0, %c0_i32 : i32, i32
  }
  func.func @transform_1(%arg0: i32) -> (i32, i32, i32) {
    %c0_i32 = arith.constant 0 : i32
    %c0_i32_0 = arith.constant 0 : i32
    %c0_i32_1 = arith.constant 0 : i32
    return %arg0, %c0_i32, %c0_i32_0 : i32, i32, i32
  }
  func.func @transform_2(%arg0: i32) -> (i32, i32, i32) {
    %c0_i32 = arith.constant 0 : i32
    %c0_i32_0 = arith.constant 0 : i32
    %c0_i32_1 = arith.constant 0 : i32
    return %arg0, %c0_i32, %c0_i32_0 : i32, i32, i32
  }
  func.func @transform_3(%arg0: i32) -> (i32, i32, i32) {
    %c0_i32 = arith.constant 0 : i32
    %c0_i32_0 = arith.constant 0 : i32
    %c0_i32_1 = arith.constant 0 : i32
    return %arg0, %c0_i32, %c0_i32_0 : i32, i32, i32
  }
  func.func @transform_4(%arg0: i32) -> (i32, i32) {
    %c0_i32 = arith.constant 0 : i32
    %c0_i32_0 = arith.constant 0 : i32
    return %arg0, %c0_i32 : i32, i32
  }
  func.func @transform_5(%arg0: i32) -> (i32, i32) {
    %c0_i32 = arith.constant 0 : i32
    %c0_i32_0 = arith.constant 0 : i32
    return %arg0, %c0_i32 : i32, i32
  }
  func.func @transform_6(%arg0: i32) -> (i32, i32) {
    %c0_i32 = arith.constant 0 : i32
    %c0_i32_0 = arith.constant 0 : i32
    %c0_i32_1 = arith.constant 0 : i32
    return %c0_i32, %c0_i32_0 : i32, i32
  }
  func.func @transform_7(%arg0: i32) -> (i32, i32, i32) {
    %c0_i32 = arith.constant 0 : i32
    %c0_i32_0 = arith.constant 0 : i32
    %c0_i32_1 = arith.constant 0 : i32
    return %arg0, %c0_i32, %c0_i32_0 : i32, i32, i32
  }
  func.func @transform_8(%arg0: i32) -> (i32, i32) {
    %c0_i32 = arith.constant 0 : i32
    %c0_i32_0 = arith.constant 0 : i32
    return %arg0, %c0_i32 : i32, i32
  }
}

</mosaic_0001>

<llo_original>
// kernel: input_embeddings_forward.1
$region0: #{input_embeddings_forward.1}
  #allocation0 [shape = 'u32[]', space=smem, size = 0x4, offset = 0x4, fixed_abs, tag = 'smem constant byte address 0x4 - core index']
  #allocation1 [shape = 'u32[144,128]{1,0:T(1,128)}', space=vmem, size = 0x12000, scoped, tag = 'internal scratch']
  %s0 = inlined_call_operand.vmem [shape: f32[2,1], index: 0, kind: input, shape index: {}]
  %s1 = inlined_call_operand.vmem [shape: f32[2,8,4], index: 1, kind: input, shape index: {}]
  %s2 = inlined_call_operand.vmem [shape: s32[2,8,1], index: 2, kind: input, shape index: {}]
  %s3 = inlined_call_operand.vmem [shape: f32[2,8,1], index: 3, kind: input, shape index: {}]
  %s4 = inlined_call_operand.vmem [shape: f32[2,6], index: 4, kind: input, shape index: {}]
  %s5 = inlined_call_operand.vmem [shape: s32[2,1], index: 5, kind: input, shape index: {}]
  %s6 = inlined_call_operand.vmem [shape: f32[32,40], index: 6, kind: input, shape index: {}]
  %s7 = inlined_call_operand.hbm [shape: f32[2,8,40], index: 7, kind: output, shape index: {0}]
  %s8 = inlined_call_operand.hbm [shape: f32[2,30], index: 8, kind: output, shape index: {1}]
  %9 = xla_tuple %s7, %s8
  %s10 = sld [smem:[#allocation0]]
  $region46: #{input_embeddings_forward.1} parent=0
    _
  %s12 = ssub.s32 1, %s10
  %s13 = scalar_select 0, %s12, %s10
  $region1: #{input_embeddings_forward.1} parent=0
    #allocation2 [shape = 'u8[8192]{0}', space=vmem, size = 0x2000, scoped, tag = 'output window, operand 0, single buffered']
    #allocation3 [shape = 's32[1]{0}', space=sflag, size = 0x4, scoped, tag = 'scoped memory for input_embeddings_forward.1']
    #allocation4 [shape = 'u8[1024]{0}', space=vmem, size = 0x400, scoped, tag = 'output window, operand 1, single buffered']
    #allocation5 [shape = 's32[1]{0}', space=sflag, size = 0x4, scoped, tag = 'scoped memory for input_embeddings_forward.1']
    %14 = vsyncpa [#allocation3], 0
    %15 = vsyncpa [#allocation5], 0
    // Predicated region
    $region2: #{input_embeddings_forward.1} parent=1 // pred_check
      _
    $region3: #{input_embeddings_forward.1} parent=1 // pred_check_branch
      %17 = sbr.rel (0) target = $region5
    $region4: #{input_embeddings_forward.1} parent=1 // pred_region
      _
    $region5: #{input_embeddings_forward.1} parent=1 // pred_fallthru
      _
    // Predicated region
    $region6: #{input_embeddings_forward.1} parent=1 // pred_check
      _
    $region7: #{input_embeddings_forward.1} parent=1 // pred_check_branch
      %19 = sbr.rel (0) target = $region9
    $region8: #{input_embeddings_forward.1} parent=1 // pred_region
      _
    $region9: #{input_embeddings_forward.1} parent=1 // pred_fallthru
      _
    // Predicated region
    $region10: #{input_embeddings_forward.1} parent=1 // pred_check
      _
    $region11: #{input_embeddings_forward.1} parent=1 // pred_check_branch
      %21 = sbr.rel (0) target = $region13
    $region12: #{input_embeddings_forward.1} parent=1 // pred_region
      _
    $region13: #{input_embeddings_forward.1} parent=1 // pred_fallthru
      _
    // Predicated region
    $region14: #{input_embeddings_forward.1} parent=1 // pred_check
      _
    $region15: #{input_embeddings_forward.1} parent=1 // pred_check_branch
      %23 = sbr.rel (0) target = $region17
    $region16: #{input_embeddings_forward.1} parent=1 // pred_region
      _
    $region17: #{input_embeddings_forward.1} parent=1 // pred_fallthru
      _
    // Predicated region
    $region18: #{input_embeddings_forward.1} parent=1 // pred_check
      _
    $region19: #{input_embeddings_forward.1} parent=1 // pred_check_branch
      %25 = sbr.rel (0) target = $region21
    $region20: #{input_embeddings_forward.1} parent=1 // pred_region
      _
    $region21: #{input_embeddings_forward.1} parent=1 // pred_fallthru
      _
    // Predicated region
    $region22: #{input_embeddings_forward.1} parent=1 // pred_check
      _
    $region23: #{input_embeddings_forward.1} parent=1 // pred_check_branch
      %27 = sbr.rel (0) target = $region25
    $region24: #{input_embeddings_forward.1} parent=1 // pred_region
      _
    $region25: #{input_embeddings_forward.1} parent=1 // pred_fallthru
      _
    // Predicated region
    $region26: #{input_embeddings_forward.1} parent=1 // pred_check
      _
    $region27: #{input_embeddings_forward.1} parent=1 // pred_check_branch
      %29 = sbr.rel (0) target = $region29
    $region28: #{input_embeddings_forward.1} parent=1 // pred_region
      _
    $region29: #{input_embeddings_forward.1} parent=1 // pred_fallthru
      _
    %v30 = vld [vmem:[%s0] sm:$0x3]
    %v31 = vld [vmem:[%s6 + $0x1b] sm:$0x1]
    %v32 = vld [vmem:[%s6 + $0x1c] sm:$0x1]
    %v33 = vlaneseq
    %v34 = vand.u32 %v33, 127
    %vm35 = vcmp.lt.s32.totalorder %v34, 16
    %37 = vset.pattern.permute.xlu0 0
    %38 = vperm.xlu0 %37, %v30
    %v39 = vpop.permute.xlu0 %38
    %v41 = vlaneseq
    %v42 = vshrl.u32 %v41, 7
    %v43 = vsub.s32 0, %v42
    %v44 = vrot.slane %v31, %v43
    %v45 = vmul.f32 %v39, %v44
    %v46 = vlaneseq
    %v47 = vshrl.u32 %v46, 7
    %v48 = vsub.s32 0, %v47
    %v49 = vrot.slane %v32, %v48
    %v50 = vadd.f32 %v45, %v49
    %v51 = vand.u32 2147483647, %v50
    %vm52 = vcmp.le.f32.partialorder %v51, 0.7853982
    %vm53 = vcmp.lt.s32.totalorder %v50, 0
    %v54 = vand.u32 %v50, 2139095040
    %v55 = vshrl.u32 %v54, 23
    %v56 = vsub.s32 %v55, 127
    %v57 = vand.u32 2147483647, %v50
    %v58 = vand.u32 %v57, 8388607
    %v59 = vor.u32 %v58, 8388608
    %v60 = vsub.s32 0, %v59
    %v61 = vadd.s32 %v56, 1
    %vm62 = vcmp.gt.s32.totalorder %v61, 0
    %v63 = vsel %vm62, %v61, 0
    %v64 = vshrl.u32 %v63, 5
    %v65 = vand.u32 %v63, 31
    %v66 = vsub.s32 32, %v65
    %v67 = vshrl.u32 683565275, %v66
    %v68 = vshll.u32 683565275, %v65
    %v69 = vshrl.u32 2475754826, %v66
    %v70 = vor.u32 %v68, %v69
    %v71 = vshll.u32 2475754826, %v65
    %v72 = vshrl.u32 2131351028, %v66
    %v73 = vor.u32 %v71, %v72
    %v74 = vshll.u32 2131351028, %v65
    %v75 = vshrl.u32 2102212464, %v66
    %v76 = vor.u32 %v74, %v75
    %v77 = vshll.u32 2102212464, %v65
    %v78 = vshrl.u32 920167782, %v66
    %v79 = vor.u32 %v77, %v78
    %v80 = vshll.u32 920167782, %v65
    %v81 = vshrl.u32 1326507024, %v66
    %v82 = vor.u32 %v80, %v81
    %vm83 = vcmp.lt.s32.totalorder %v64, 1
    %vm84 = vcmp.lt.s32.totalorder %v64, 2
    %vm85 = vcmp.lt.s32.totalorder %v64, 3
    %vm86 = vcmp.lt.s32.totalorder %v64, 4
    %v87 = vsel %vm83, %v67, %v70
    %v88 = vsel %vm86, %v76, 2102212464
    %v89 = vsel %vm85, %v73, %v88
    %v90 = vsel %vm84, %v87, %v89
    %v91 = vsel %vm83, %v70, %v73
    %v92 = vsel %vm86, %v79, 920167782
    %v93 = vsel %vm85, %v76, %v92
    %v94 = vsel %vm84, %v91, %v93
    %v95 = vsel %vm83, %v73, %v76
    %v96 = vsel %vm86, %v82, 1326507024
    %v97 = vsel %vm85, %v79, %v96
    %v98 = vsel %vm84, %v95, %v97
    %v99 = vshll.u32 %v59, 8
    %v100 = vmul.u32.u64.compose %v99, %v98
    %v101 = vextract.low.u32 %v100
    %v102 = vextract.high.u32 %v100
    %v103 = vmul.u32.u64.compose %v99, %v94
    %v104 = vextract.low.u32 %v103
    %v105 = vextract.high.u32 %v103
    %v106 = vmul.u32 %v99, %v90
    %v107 = vadd.s32 %v102, %v104
    %vm108 = vc.u32 %v102, %v104
    %v109 = vadd.s32 %v105, 1
    %v110 = vsel %vm108, %v109, %v105
    %v111 = vadd.s32 %v106, %v110
    %v112 = vadd.s32 %v111, 536870912
    %v113 = vshrl.u32 %v112, 30
    %v114 = vshll.u32 %v113, 30
    %v115 = vsub.s32 %v111, %v114
    %vm116 = vcmp.lt.s32.totalorder %v115, 0
    %v117 = vsub.s32 0, %v115
    %v118 = vsel %vm116, %v117, %v115
    %v119 = vclz %v118
    %v120 = vsub.s32 %v119, 2
    %vm121 = vcmp.gt.s32.totalorder 0, %v120
    %v122 = vsel %vm121, 0, %v120
    %v123 = vsub.s32 32, %v122
    %v124 = vshll.u32 %v115, %v122
    %v125 = vshrl.u32 %v107, %v123
    %v126 = vor.u32 %v124, %v125
    %v127 = vsub.s32 4294967266, %v122
    %v128 = vadd.s32 %v127, 127
    %v129 = vshll.u32 %v128, 23
    %v130 = vor.u32 4788187, %v129
    %v131 = vand.u32 2147483647, %v130
    %v133 = vcvt.s32.f32 %v126
    %v134 = vmul.f32 %v133, %v131
    %v135 = vxor.u32 %v134, 2147483648
    %v136 = vsel %vm53, %v135, %v134
    %v137 = vsub.s32 4, %v113
    %v138 = vsel %vm53, %v137, %v113
    %v139 = vsel %vm52, %v50, %v136
    %v140 = vsel %vm52, 0, %v138
    %v141 = vcosq.f32.pop %v139
    %v142 = vsinq.f32.pop %v139
    %vm143 = vweird.f32 %v50
    %v144 = vand.u32 %v140, 3
    %vm145 = vcmp.lt.s32.totalorder %v144, 2
    %vm146 = vcmp.eq.s32.totalorder %v144, 0
    %v147 = vxor.u32 %v142, 2147483648
    %v148 = vsel %vm146, %v141, %v147
    %vm149 = vcmp.eq.s32.totalorder %v144, 2
    %v150 = vxor.u32 %v141, 2147483648
    %v151 = vsel %vm149, %v150, %v142
    %v152 = vsel %vm145, %v148, %v151
    %v153 = vsel %vm143, nan, %v152
    %v154 = vsel %vm35, 1, 0
    %vm155 = vcmp.eq.s32.totalorder %v154, 1
    %v156 = vsel %vm155, %v153, 0.0
    %v157 = vld [vmem:[%s6 + $0x19] sm:$0x1]
    %v158 = vlaneseq
    %v159 = vshrl.u32 %v158, 7
    %v160 = vsub.s32 0, %v159
    %v161 = vrot.slane %v157, %v160
    %v162 = vadd.f32 %v156, %v161
    %v163 = vld [vmem:[%s6 + $0x1a] sm:$0x1]
    %v164 = vlaneseq
    %v165 = vshrl.u32 %v164, 7
    %v166 = vsub.s32 0, %v165
    %v167 = vrot.slane %v163, %v166
    %v168 = vadd.f32 %v156, %v167
    %v169 = vld [vmem:[%s1] sm:$0xff]
    %v170 = vld [vmem:[%s1 + $0x8] sm:$0xff]
    %v171 = vld [vmem:[%s2] sm:$0xff]
    %v172 = vld [vmem:[%s2 + $0x8] sm:$0xff]
    %173 = vset.pattern.permute.xlu0 0
    %174 = vperm.xlu0 %173, %v171
    %v175 = vpop.permute.xlu0 %174
    %176 = vset.pattern.permute.xlu0 0
    %177 = vperm.xlu0 %176, %v172
    %v178 = vpop.permute.xlu0 %177
    %vm179 = vcmp.eq.s32.totalorder %v175, %v34
    %vm180 = vcmp.eq.s32.totalorder %v178, %v34
    %v181 = vsel %vm179, 1, 0
    %v182 = vsel %vm180, 1, 0
    %v183 = vcvt.s32.f32 %v181
    %v184 = vcvt.s32.f32 %v182
    %v185 = vld [vmem:[%s6] sm:$0xf]
    %v186 = vld [vmem:[%s6 + $0x4] sm:$0xff]
    %vm187 = vcmask 64512
    %v189 = vsel %vm187, %v183, 0
    %v192 = vsel %vm187, %v184, 0
    %194 = vmatprep.subr.mxu0 0.0
    %195 = vmatpush1.msra.mxu0 0.0
    %196 = vmatprep.subr.mxu0 0.0
    %197 = vmatpush1.msra.mxu0 0.0
    %198 = vmatprep.subr.mxu0 0.0
    %199 = vmatpush1.msra.mxu0 0.0
    %200 = vmatprep.subr.mxu0 0.0
    %201 = vmatpush1.msra.mxu0 0.0
    %202 = vmatprep.subr.mxu0 0.0
    %203 = vmatpush1.msra.mxu0 0.0
    %204 = vmatprep.subr.mxu0 0.0
    %205 = vmatpush1.msra.mxu0 0.0
    %206 = vmatprep.subr.mxu0 0.0
    %207 = vmatpush1.msra.mxu0 0.0
    %208 = vmatprep.subr.mxu0 0.0
    %209 = vmatpush1.msra.mxu0 0.0
    %210 = vmatprep.subr.mxu0 0.0
    %211 = vmatpush1.msra.mxu0 0.0
    %212 = vmatprep.subr.mxu0 0.0
    %213 = vmatpush1.msra.mxu0 0.0
    %214 = vmatprep.subr.mxu0 0.0
    %215 = vmatpush1.msra.mxu0 0.0
    %216 = vmatprep.subr.mxu0 0.0
    %217 = vmatpush1.msra.mxu0 0.0
    %218 = vmatprep.subr.mxu0 0.0
    %219 = vmatpush1.msra.mxu0 0.0
    %220 = vmatprep.subr.mxu0 0.0
    %221 = vmatpush1.msra.mxu0 0.0
    %222 = vmatprep.subr.mxu0 0.0
    %223 = vmatpush1.msra.mxu0 0.0
    %224 = vmatprep.subr.mxu0 0.0
    %225 = vmatpush1.msra.mxu0 %v186
    %226 = vmatprep.subr.mxu0 0.0
    %227 = vmatpush2.msra.mxu0 0.0
    %228 = vmatprep.subr.mxu0 0.0
    %229 = vmatpush2.msra.mxu0 0.0
    %230 = vmatprep.subr.mxu0 0.0
    %231 = vmatpush2.msra.mxu0 0.0
    %232 = vmatprep.subr.mxu0 0.0
    %233 = vmatpush2.msra.mxu0 0.0
    %234 = vmatprep.subr.mxu0 0.0
    %235 = vmatpush2.msra.mxu0 0.0
    %236 = vmatprep.subr.mxu0 0.0
    %237 = vmatpush2.msra.mxu0 0.0
    %238 = vmatprep.subr.mxu0 0.0
    %239 = vmatpush2.msra.mxu0 0.0
    %240 = vmatprep.subr.mxu0 0.0
    %241 = vmatpush2.msra.mxu0 0.0
    %242 = vmatprep.subr.mxu0 0.0
    %243 = vmatpush2.msra.mxu0 0.0
    %244 = vmatprep.subr.mxu0 0.0
    %245 = vmatpush2.msra.mxu0 0.0
    %246 = vmatprep.subr.mxu0 0.0
    %247 = vmatpush2.msra.mxu0 0.0
    %248 = vmatprep.subr.mxu0 0.0
    %249 = vmatpush2.msra.mxu0 0.0
    %250 = vmatprep.subr.mxu0 0.0
    %251 = vmatpush2.msra.mxu0 0.0
    %252 = vmatprep.subr.mxu0 0.0
    %253 = vmatpush2.msra.mxu0 0.0
    %254 = vmatprep.subr.mxu0 0.0
    %255 = vmatpush2.msra.mxu0 0.0
    %256 = vmatprep.subr.mxu0 0.0
    %257 = vmatpush2.msra.mxu0 0.0
    %258 = vmatprep.mubr.f32.mxu0 0.0
    %259 = vmatmul.mubr.f32.gmra.mxu0 %v189
    %v260 = vpop.f32.mrf.mxu0
    %v261 = vadd.f32 0.0, %v260
    %v262 = vpop.f32.mrf.mxu0
    %263 = vmatprep.mubr.f32.mxu0 0.0
    %264 = vmatmul.mubr.f32.gmra.mxu0 %v192
    %v265 = vpop.f32.mrf.mxu0
    %v266 = vadd.f32 0.0, %v265
    %v267 = vpop.f32.mrf.mxu0
    %268 = vdwg.mxu0
    %vm269 = vcmask 31744
    %v271 = vsel %vm269, %v169, 0
    %v274 = vsel %vm269, %v170, 0
    %vm276 = vcmask 1043456
    %v278 = vsel %vm276, %v185, 0
    %280 = vmatprep.subr.mxu0 0.0
    %281 = vmatpush1.msra.mxu0 0.0
    %282 = vmatprep.subr.mxu0 0.0
    %283 = vmatpush1.msra.mxu0 0.0
    %284 = vmatprep.subr.mxu0 0.0
    %285 = vmatpush1.msra.mxu0 0.0
    %286 = vmatprep.subr.mxu0 0.0
    %287 = vmatpush1.msra.mxu0 0.0
    %288 = vmatprep.subr.mxu0 0.0
    %289 = vmatpush1.msra.mxu0 0.0
    %290 = vmatprep.subr.mxu0 0.0
    %291 = vmatpush1.msra.mxu0 0.0
    %292 = vmatprep.subr.mxu0 0.0
    %293 = vmatpush1.msra.mxu0 0.0
    %294 = vmatprep.subr.mxu0 0.0
    %295 = vmatpush1.msra.mxu0 0.0
    %296 = vmatprep.subr.mxu0 0.0
    %297 = vmatpush1.msra.mxu0 0.0
    %298 = vmatprep.subr.mxu0 0.0
    %299 = vmatpush1.msra.mxu0 0.0
    %300 = vmatprep.subr.mxu0 0.0
    %301 = vmatpush1.msra.mxu0 0.0
    %302 = vmatprep.subr.mxu0 0.0
    %303 = vmatpush1.msra.mxu0 0.0
    %304 = vmatprep.subr.mxu0 0.0
    %305 = vmatpush1.msra.mxu0 0.0
    %306 = vmatprep.subr.mxu0 0.0
    %307 = vmatpush1.msra.mxu0 0.0
    %308 = vmatprep.subr.mxu0 0.0
    %309 = vmatpush1.msra.mxu0 0.0
    %310 = vmatprep.subr.mxu0 0.0
    %311 = vmatpush1.msra.mxu0 %v278
    %312 = vmatprep.subr.mxu0 0.0
    %313 = vmatpush2.msra.mxu0 0.0
    %314 = vmatprep.subr.mxu0 0.0
    %315 = vmatpush2.msra.mxu0 0.0
    %316 = vmatprep.subr.mxu0 0.0
    %317 = vmatpush2.msra.mxu0 0.0
    %318 = vmatprep.subr.mxu0 0.0
    %319 = vmatpush2.msra.mxu0 0.0
    %320 = vmatprep.subr.mxu0 0.0
    %321 = vmatpush2.msra.mxu0 0.0
    %322 = vmatprep.subr.mxu0 0.0
    %323 = vmatpush2.msra.mxu0 0.0
    %324 = vmatprep.subr.mxu0 0.0
    %325 = vmatpush2.msra.mxu0 0.0
    %326 = vmatprep.subr.mxu0 0.0
    %327 = vmatpush2.msra.mxu0 0.0
    %328 = vmatprep.subr.mxu0 0.0
    %329 = vmatpush2.msra.mxu0 0.0
    %330 = vmatprep.subr.mxu0 0.0
    %331 = vmatpush2.msra.mxu0 0.0
    %332 = vmatprep.subr.mxu0 0.0
    %333 = vmatpush2.msra.mxu0 0.0
    %334 = vmatprep.subr.mxu0 0.0
    %335 = vmatpush2.msra.mxu0 0.0
    %336 = vmatprep.subr.mxu0 0.0
    %337 = vmatpush2.msra.mxu0 0.0
    %338 = vmatprep.subr.mxu0 0.0
    %339 = vmatpush2.msra.mxu0 0.0
    %340 = vmatprep.subr.mxu0 0.0
    %341 = vmatpush2.msra.mxu0 0.0
    %342 = vmatprep.subr.mxu0 0.0
    %343 = vmatpush2.msra.mxu0 0.0
    %344 = vmatprep.mubr.f32.mxu0 0.0
    %345 = vmatmul.mubr.f32.gmra.mxu0 %v271
    %v346 = vpop.f32.mrf.mxu0
    %v347 = vadd.f32 %v261, %v346
    %v348 = vpop.f32.mrf.mxu0
    %349 = vmatprep.mubr.f32.mxu0 0.0
    %350 = vmatmul.mubr.f32.gmra.mxu0 %v274
    %v351 = vpop.f32.mrf.mxu0
    %v352 = vadd.f32 %v266, %v351
    %v353 = vpop.f32.mrf.mxu0
    %354 = vdwg.mxu0
    %v357 = vunpack.c.l.s4 1966171168
    %v358 = vunpack.c.0.s8 %v357
    %v359 = vlaneseq
    %v360 = vshrl.u32 %v359, 7
    %v361 = vsub.s32 %v358, %v360
    %v362 = vrot.slane %v162, %v361
    %v363 = vcombine.high %v362, %v362
    %v365 = vunpack.c.l.s4 1966171168
    %v366 = vunpack.c.0.s8 %v365
    %v367 = vlaneseq
    %v368 = vshrl.u32 %v367, 7
    %v369 = vsub.s32 %v366, %v368
    %v370 = vrot.slane %v362, %v369
    %v372 = vunpack.c.l.s4 1966171168
    %v373 = vunpack.c.0.s8 %v372
    %v374 = vlaneseq
    %v375 = vshrl.u32 %v374, 7
    %v376 = vsub.s32 %v373, %v375
    %v377 = vrot.slane %v363, %v376
    %v378 = vlaneseq
    %v379 = vshrl.u32 %v378, 7
    %v380 = vsub.s32 0, %v379
    %v381 = vrot.slane %v370, %v380
    %v382 = vlaneseq
    %v383 = vshrl.u32 %v382, 7
    %v384 = vsub.s32 0, %v383
    %v385 = vrot.slane %v377, %v384
    %v388 = vadd.f32 %v347, %v381
    %v389 = vadd.f32 %v352, %v385
    %v390 = vld [vmem:[%s3] sm:$0xff]
    %v391 = vld [vmem:[%s3 + $0x8] sm:$0xff]
    %393 = vset.pattern.permute.xlu0 0
    %394 = vperm.xlu0 %393, %v390
    %v395 = vpop.permute.xlu0 %394
    %398 = vset.pattern.permute.xlu0 0
    %399 = vperm.xlu0 %398, %v391
    %v400 = vpop.permute.xlu0 %399
    %v402 = vmul.f32 %v388, %v395
    %v403 = vmul.f32 %v389, %v400
    %vm404 = vcmask 326656
    %405 = vst.msk [vmem:[#allocation2] sm:$0xff] %vm404, %v402
    %406 = vst.msk [vmem:[#allocation2 + $0x8] sm:$0xff] %vm404, %v403
    %v407 = vld [vmem:[%s5] sm:$0x3]
    %408 = vset.pattern.permute.xlu0 0
    %409 = vperm.xlu0 %408, %v407
    %v410 = vpop.permute.xlu0 %409
    %vm411 = vcmp.eq.s32.totalorder %v410, %v34
    %v412 = vsel %vm411, 1, 0
    %v413 = vcvt.s32.f32 %v412
    %v414 = vld [vmem:[%s4] sm:$0x3]
    %v415 = vld [vmem:[%s6 + $0xc] sm:$0x3f]
    %v416 = vld [vmem:[%s6 + $0x12] sm:$0x7f]
    %vm417 = vcmask 56320
    %v419 = vsel %vm417, %v413, 0
    %vm421 = vcmask 1046528
    %v423 = vsel %vm421, %v416, 0
    %425 = vmatprep.subr.mxu0 0.0
    %426 = vmatpush1.msra.mxu0 0.0
    %427 = vmatprep.subr.mxu0 0.0
    %428 = vmatpush1.msra.mxu0 0.0
    %429 = vmatprep.subr.mxu0 0.0
    %430 = vmatpush1.msra.mxu0 0.0
    %431 = vmatprep.subr.mxu0 0.0
    %432 = vmatpush1.msra.mxu0 0.0
    %433 = vmatprep.subr.mxu0 0.0
    %434 = vmatpush1.msra.mxu0 0.0
    %435 = vmatprep.subr.mxu0 0.0
    %436 = vmatpush1.msra.mxu0 0.0
    %437 = vmatprep.subr.mxu0 0.0
    %438 = vmatpush1.msra.mxu0 0.0
    %439 = vmatprep.subr.mxu0 0.0
    %440 = vmatpush1.msra.mxu0 0.0
    %441 = vmatprep.subr.mxu0 0.0
    %442 = vmatpush1.msra.mxu0 0.0
    %443 = vmatprep.subr.mxu0 0.0
    %444 = vmatpush1.msra.mxu0 0.0
    %445 = vmatprep.subr.mxu0 0.0
    %446 = vmatpush1.msra.mxu0 0.0
    %447 = vmatprep.subr.mxu0 0.0
    %448 = vmatpush1.msra.mxu0 0.0
    %449 = vmatprep.subr.mxu0 0.0
    %450 = vmatpush1.msra.mxu0 0.0
    %451 = vmatprep.subr.mxu0 0.0
    %452 = vmatpush1.msra.mxu0 0.0
    %453 = vmatprep.subr.mxu0 0.0
    %454 = vmatpush1.msra.mxu0 0.0
    %455 = vmatprep.subr.mxu0 0.0
    %456 = vmatpush1.msra.mxu0 %v423
    %457 = vmatprep.subr.mxu0 0.0
    %458 = vmatpush2.msra.mxu0 0.0
    %459 = vmatprep.subr.mxu0 0.0
    %460 = vmatpush2.msra.mxu0 0.0
    %461 = vmatprep.subr.mxu0 0.0
    %462 = vmatpush2.msra.mxu0 0.0
    %463 = vmatprep.subr.mxu0 0.0
    %464 = vmatpush2.msra.mxu0 0.0
    %465 = vmatprep.subr.mxu0 0.0
    %466 = vmatpush2.msra.mxu0 0.0
    %467 = vmatprep.subr.mxu0 0.0
    %468 = vmatpush2.msra.mxu0 0.0
    %469 = vmatprep.subr.mxu0 0.0
    %470 = vmatpush2.msra.mxu0 0.0
    %471 = vmatprep.subr.mxu0 0.0
    %472 = vmatpush2.msra.mxu0 0.0
    %473 = vmatprep.subr.mxu0 0.0
    %474 = vmatpush2.msra.mxu0 0.0
    %475 = vmatprep.subr.mxu0 0.0
    %476 = vmatpush2.msra.mxu0 0.0
    %477 = vmatprep.subr.mxu0 0.0
    %478 = vmatpush2.msra.mxu0 0.0
    %479 = vmatprep.subr.mxu0 0.0
    %480 = vmatpush2.msra.mxu0 0.0
    %481 = vmatprep.subr.mxu0 0.0
    %482 = vmatpush2.msra.mxu0 0.0
    %483 = vmatprep.subr.mxu0 0.0
    %484 = vmatpush2.msra.mxu0 0.0
    %485 = vmatprep.subr.mxu0 0.0
    %486 = vmatpush2.msra.mxu0 0.0
    %487 = vmatprep.subr.mxu0 0.0
    %488 = vmatpush2.msra.mxu0 0.0
    %489 = vmatprep.mubr.f32.mxu0 0.0
    %490 = vmatmul.mubr.f32.gmra.mxu0 %v419
    %v491 = vpop.f32.mrf.mxu0
    %v492 = vadd.f32 0.0, %v491
    %v493 = vpop.f32.mrf.mxu0
    %494 = vdwg.mxu0
    %vm495 = vcmask 48128
    %v497 = vsel %vm495, %v414, 0
    %vm499 = vcmask 1045504
    %v501 = vsel %vm499, %v415, 0
    %503 = vmatprep.subr.mxu0 0.0
    %504 = vmatpush1.msra.mxu0 0.0
    %505 = vmatprep.subr.mxu0 0.0
    %506 = vmatpush1.msra.mxu0 0.0
    %507 = vmatprep.subr.mxu0 0.0
    %508 = vmatpush1.msra.mxu0 0.0
    %509 = vmatprep.subr.mxu0 0.0
    %510 = vmatpush1.msra.mxu0 0.0
    %511 = vmatprep.subr.mxu0 0.0
    %512 = vmatpush1.msra.mxu0 0.0
    %513 = vmatprep.subr.mxu0 0.0
    %514 = vmatpush1.msra.mxu0 0.0
    %515 = vmatprep.subr.mxu0 0.0
    %516 = vmatpush1.msra.mxu0 0.0
    %517 = vmatprep.subr.mxu0 0.0
    %518 = vmatpush1.msra.mxu0 0.0
    %519 = vmatprep.subr.mxu0 0.0
    %520 = vmatpush1.msra.mxu0 0.0
    %521 = vmatprep.subr.mxu0 0.0
    %522 = vmatpush1.msra.mxu0 0.0
    %523 = vmatprep.subr.mxu0 0.0
    %524 = vmatpush1.msra.mxu0 0.0
    %525 = vmatprep.subr.mxu0 0.0
    %526 = vmatpush1.msra.mxu0 0.0
    %527 = vmatprep.subr.mxu0 0.0
    %528 = vmatpush1.msra.mxu0 0.0
    %529 = vmatprep.subr.mxu0 0.0
    %530 = vmatpush1.msra.mxu0 0.0
    %531 = vmatprep.subr.mxu0 0.0
    %532 = vmatpush1.msra.mxu0 0.0
    %533 = vmatprep.subr.mxu0 0.0
    %534 = vmatpush1.msra.mxu0 %v501
    %535 = vmatprep.subr.mxu0 0.0
    %536 = vmatpush2.msra.mxu0 0.0
    %537 = vmatprep.subr.mxu0 0.0
    %538 = vmatpush2.msra.mxu0 0.0
    %539 = vmatprep.subr.mxu0 0.0
    %540 = vmatpush2.msra.mxu0 0.0
    %541 = vmatprep.subr.mxu0 0.0
    %542 = vmatpush2.msra.mxu0 0.0
    %543 = vmatprep.subr.mxu0 0.0
    %544 = vmatpush2.msra.mxu0 0.0
    %545 = vmatprep.subr.mxu0 0.0
    %546 = vmatpush2.msra.mxu0 0.0
    %547 = vmatprep.subr.mxu0 0.0
    %548 = vmatpush2.msra.mxu0 0.0
    %549 = vmatprep.subr.mxu0 0.0
    %550 = vmatpush2.msra.mxu0 0.0
    %551 = vmatprep.subr.mxu0 0.0
    %552 = vmatpush2.msra.mxu0 0.0
    %553 = vmatprep.subr.mxu0 0.0
    %554 = vmatpush2.msra.mxu0 0.0
    %555 = vmatprep.subr.mxu0 0.0
    %556 = vmatpush2.msra.mxu0 0.0
    %557 = vmatprep.subr.mxu0 0.0
    %558 = vmatpush2.msra.mxu0 0.0
    %559 = vmatprep.subr.mxu0 0.0
    %560 = vmatpush2.msra.mxu0 0.0
    %561 = vmatprep.subr.mxu0 0.0
    %562 = vmatpush2.msra.mxu0 0.0
    %563 = vmatprep.subr.mxu0 0.0
    %564 = vmatpush2.msra.mxu0 0.0
    %565 = vmatprep.subr.mxu0 0.0
    %566 = vmatpush2.msra.mxu0 0.0
    %567 = vmatprep.mubr.f32.mxu0 0.0
    %568 = vmatmul.mubr.f32.gmra.mxu0 %v497
    %v569 = vpop.f32.mrf.mxu0
    %v570 = vadd.f32 %v492, %v569
    %v571 = vpop.f32.mrf.mxu0
    %572 = vdwg.mxu0
    %v573 = vadd.f32 %v570, %v168
    %vm574 = vcmask 238592
    %575 = vst.msk [vmem:[#allocation4] sm:$0x3] %vm574, %v573
    // Predicated region
    $region30: #{input_embeddings_forward.1} parent=1 // pred_check
      _
    $region31: #{input_embeddings_forward.1} parent=1 // pred_check_branch
      %577 = sbr.rel (0) target = $region33
    $region32: #{input_embeddings_forward.1} parent=1 // pred_region
      %s579 = ssub.s32 256, 256
      %580 = vsyncadd [#allocation3], %s579
      %s581 = sshll.u32 [#allocation2], 4
      %s582 = int_to_ptr.vmem [resolvable:$true] %s581
      %587 = dma.vmem_to_hbm [thread:$0]  %s582, 256, %s7, [#allocation3], 128, 128, 8
    $region33: #{input_embeddings_forward.1} parent=1 // pred_fallthru
      _
    // Predicated region
    $region34: #{input_embeddings_forward.1} parent=1 // pred_check
      _
    $region35: #{input_embeddings_forward.1} parent=1 // pred_check_branch
      %589 = sbr.rel (0) target = $region37
    $region36: #{input_embeddings_forward.1} parent=1 // pred_region
      %s591 = ssub.s32 32, 32
      %592 = vsyncadd [#allocation5], %s591
      %s594 = sshll.u32 [#allocation4], 4
      %s595 = int_to_ptr.vmem [resolvable:$true] %s594
      %597 = dma.vmem_to_hbm [thread:$0]  %s595, 32, %s8, [#allocation5]
    $region37: #{input_embeddings_forward.1} parent=1 // pred_fallthru
      _
    // Predicated region
    $region38: #{input_embeddings_forward.1} parent=1 // pred_check
      _
    $region39: #{input_embeddings_forward.1} parent=1 // pred_check_branch
      %599 = sbr.rel (0) target = $region41
    $region40: #{input_embeddings_forward.1} parent=1 // pred_region
      %600 = dma.done [#allocation3], 256
    $region41: #{input_embeddings_forward.1} parent=1 // pred_fallthru
      _
    // Predicated region
    $region42: #{input_embeddings_forward.1} parent=1 // pred_check
      _
    $region43: #{input_embeddings_forward.1} parent=1 // pred_check_branch
      %602 = sbr.rel (0) target = $region45
    $region44: #{input_embeddings_forward.1} parent=1 // pred_region
      %603 = dma.done [#allocation5], 32
    $region45: #{input_embeddings_forward.1} parent=1 // pred_fallthru
      _
    %604 = vsyncpa [#allocation3], 1
    %605 = vsyncpa [#allocation5], 1

</llo_original>
